<compile_context>
chip_gen: v7x
topology: tpu7x:2x2x1
jax: 0.10.0
libtpu: 0.0.40
codegen_flags: <defaults>
</compile_context>

<pallas_src>
import math

import jax
import jax.numpy as jnp
from jax.experimental import pallas as pl
from jax.experimental.pallas import tpu as pltpu


# ----------------------------------------------------------------------------
# Kernel: Horner-style diffusion of the pre-mixed terms + bias + ReLU for one
#         lane-dense batch tile.
#   z_ref : (K, V, TB*C)  z_k = x @ W_k, batch folded into the lane axis
#   a_ref : (S, V, V)     pre-transposed adjacencies (A^T), grid-invariant
#   b_ref : (1, TB*C)     tiled bias (f32), grid-invariant
#   o_ref : (V, TB*C)     output tile (lane-dense)
# ----------------------------------------------------------------------------
def _make_gcn_kernel(num_supports: int, order: int, compute_dtype):
    f32 = jnp.float32

    def kernel(z_ref, a_ref, b_ref, o_ref):
        # identity term + bias (f32 accumulation throughout)
        acc = z_ref[0].astype(f32) + b_ref[...]

        for s in range(num_supports):
            a = a_ref[s]                                   # (V, V), compute dtype
            base = 1 + s * order
            # Horner: t = z_{s,order}; t = z_{s,p} + A^T t for p = order-1..1
            t = z_ref[base + order - 1].astype(f32)
            for p in range(order - 1, 0, -1):
                t = z_ref[base + p - 1].astype(f32) + jnp.dot(
                    a, t.astype(compute_dtype), preferred_element_type=f32)
            acc = acc + jnp.dot(a, t.astype(compute_dtype),
                                preferred_element_type=f32)

        o_ref[...] = jnp.maximum(acc, 0.0).astype(o_ref.dtype)   # mlp ReLU

    return kernel


def _default_target_lanes():
    """MXU-width-matched lane target per TPU generation."""
    try:
        kind = jax.devices()[0].device_kind.lower()
    except Exception:
        return 128
    if ("v6" in kind) or ("v7" in kind):
        return 256          # 256-wide MXU
    return 128              # v5e and older: 128-wide MXU


# ----------------------------------------------------------------------------
# Wrapper
# ----------------------------------------------------------------------------
def gcn_forward(x, supports, nodevec1, nodevec2, w, b, *, order=2,
                compute_dtype=None, block_batch=None, min_grid_steps=8):
    """Pallas implementation of GCN.forward (support_len > 0, adp=1).

    x        : (N, V, C)
    supports : list of (V, V) adjacency matrices
    nodevec1 : (V, 10), nodevec2 : (10, V)
    w        : (K*C, C)  -- torch Linear weight, pre-transposed (weight.T)
    b        : (1, C)    -- torch Linear bias
    compute_dtype : matmul operand dtype (jnp.bfloat16 recommended on all of
                    v5e/v6e/v7x); accumulation / bias / ReLU / stores stay f32.
    """
    N, V, C = x.shape
    cdt = x.dtype if compute_dtype is None else compute_dtype
    f32 = jnp.float32

    # --- adaptive adjacency (tiny; let XLA fuse it into the stack) ----------
    adp = jax.nn.softmax(
        jnp.maximum(nodevec1.astype(f32) @ nodevec2.astype(f32), 0.0), axis=1)

    a_all = jnp.stack([a.astype(f32) for a in supports] + [adp], axis=0)
    a_all_t = jnp.transpose(a_all, (0, 2, 1)).astype(cdt)        # A^T, once
    S = a_all.shape[0]
    K = order * S + 1
    assert w.shape == (K * C, C), (w.shape, K, C)
    assert b.shape == (1, C), b.shape

    # --- lane-dense batch tiling ---------------------------------------------
    tb_base = (C * 128 // math.gcd(C, 128)) // C   # smallest tb with tb*C % 128 == 0
    if block_batch is None:
        target_lanes = _default_target_lanes()
        m = max(1, target_lanes // (tb_base * C))
        # keep enough grid steps for software pipelining / per-core work (v7x)
        while m > 1 and pl.cdiv(N, tb_base * m) < min_grid_steps:
            m -= 1
        tb = tb_base * m
    else:
        tb = int(block_batch)
        assert tb % tb_base == 0, (
            f"block_batch={tb} must be a multiple of {tb_base} so the tile is "
            f"lane-dense (multiple of 128 lanes)")
    tbc = tb * C
    n_pad = pl.cdiv(N, tb) * tb
    steps = n_pad // tb

    # x: (N, V, C) -> (V, N_pad, C), batch folded into the lane axis later.
    x_t = jnp.transpose(x, (1, 0, 2)).astype(f32)
    if n_pad != N:
        x_t = jnp.pad(x_t, ((0, 0), (0, n_pad - N), (0, 0)))

    # Per-term channel mix in the wrapper: z_k = x @ W_k  (tiny (C,C) matmuls,
    # same total FLOPs as the original Linear; XLA fuses with the transpose).
    w_k = w.astype(f32).reshape(K, C, C)
    z = jnp.einsum('vnd,kdc->kvnc', x_t, w_k).reshape(K, V, n_pad * C).astype(cdt)
    b_tiled = jnp.tile(b.astype(f32), (1, tb))                   # (1, TB*C)

    kernel = _make_gcn_kernel(S, order, cdt)

    # --- cost estimate & VMEM budget -----------------------------------------
    flops = steps * (2 * V * V * tbc * (S * order))
    bytes_accessed = int(z.size * z.dtype.itemsize
                         + a_all_t.size * a_all_t.dtype.itemsize
                         + b_tiled.size * b_tiled.dtype.itemsize
                         + V * n_pad * C * x.dtype.itemsize)
    itm = jnp.dtype(cdt).itemsize
    vmem_need = (2 * K * V * tbc * itm          # double-buffered z tiles
                 + 2 * V * tbc * x.dtype.itemsize   # double-buffered out tiles
                 + 2 * S * V * V * itm              # adjacency (invariant)
                 + 2 * tbc * 4)                     # bias (invariant)
    vmem_limit = int(min(max(3 * vmem_need + (8 << 20), 32 << 20), 64 << 20))

    out2 = pl.pallas_call(
        kernel,
        out_shape=jax.ShapeDtypeStruct((V, n_pad * C), x.dtype),
        grid=(steps,),
        in_specs=[
            pl.BlockSpec((K, V, tbc), lambda i: (0, 0, i)),   # z tiles (lane-dense)
            pl.BlockSpec((S, V, V), lambda i: (0, 0, 0)),     # A^T stack (invariant)
            pl.BlockSpec((1, tbc), lambda i: (0, 0)),         # tiled bias (invariant)
        ],
        out_specs=pl.BlockSpec((V, tbc), lambda i: (0, i)),
        compiler_params=pltpu.CompilerParams(
            dimension_semantics=("parallel",),
            vmem_limit_bytes=vmem_limit),
        cost_estimate=pl.CostEstimate(flops=int(flops), transcendentals=0,
                                      bytes_accessed=bytes_accessed),
    )(z, a_all_t, b_tiled)

    # (V, N_pad*C) -> (N, V, C)
    out = jnp.transpose(out2.reshape(V, n_pad, C), (1, 0, 2))[:N]
    return out


# ----------------------------------------------------------------------------
# Pure-JAX reference (mirrors the PyTorch forward exactly)
# ----------------------------------------------------------------------------
def gcn_ref(x, supports, nodevec1, nodevec2, w, b, *, order=2):
    adp = jax.nn.softmax(jnp.maximum(nodevec1 @ nodevec2, 0.0), axis=1)
    sup = list(supports) + [adp]
    out = [x]
    for a in sup:
        x1 = jnp.einsum('nvc,vw->nwc', x, a)
        out.append(x1)
        for _ in range(2, order + 1):
            x1 = jnp.einsum('nvc,vw->nwc', x1, a)
            out.append(x1)
    h = jnp.concatenate(out, axis=-1) @ w + b
    return jnp.maximum(h, 0.0)


if __name__ == "__main__":
    # Small, forward-consistent shapes:
    #   batch N=32, nodes V=16, channels C=8, one explicit support, adp=1,
    #   order=2 -> K = order*(support_len+adp)+1 = 5, C_total = 40.
    #   Batch tile TB=16 -> TB*C = 128 lanes (lane-dense), grid = (2,).
    N, V, C = 32, 16, 8
    support_len, adp_flag, order = 1, 1, 2
    c_total = (order * (support_len + adp_flag) + 1) * C

    key = jax.random.PRNGKey(0)
    k_x, k_sup, k_nv1, k_nv2, k_w, k_b = jax.random.split(key, 6)

    x = jax.random.normal(k_x, (N, V, C), dtype=jnp.float32)
    # one explicit support: a row-normalized non-negative adjacency
    a_raw = jnp.abs(jax.random.normal(k_sup, (V, V), dtype=jnp.float32))
    support0 = a_raw / jnp.sum(a_raw, axis=1, keepdims=True)
    supports = [support0]

    # parameters (deterministic init, matching __init__ shapes)
    nodevec1 = jax.random.normal(k_nv1, (V, 10), dtype=jnp.float32)
    nodevec2 = jax.random.normal(k_nv2, (10, V), dtype=jnp.float32)
    w = jax.random.normal(k_w, (c_total, C), dtype=jnp.float32) * 0.1  # weight^T
    b = jax.random.normal(k_b, (1, C), dtype=jnp.float32) * 0.1        # bias

    ref = gcn_ref(x, supports, nodevec1, nodevec2, w, b, order=order)

    # f32 operand path: strict check.
    out = gcn_forward(x, supports, nodevec1, nodevec2, w, b, order=order)
    out = jax.block_until_ready(out)
    assert out.shape == (N, V, C)
    assert jnp.allclose(out, ref, rtol=1e-3, atol=1e-3), (
        f"f32 max abs err {jnp.max(jnp.abs(out - ref))}")

    # bf16 operand path (all of v5e/v6e/v7x MXUs are bf16-native); accumulation
    # stays f32 in-kernel, so tolerance only covers bf16 operand rounding.
    out_bf16 = gcn_forward(x, supports, nodevec1, nodevec2, w, b, order=order,
                           compute_dtype=jnp.bfloat16)
    out_bf16 = jax.block_until_ready(out_bf16)
    assert jnp.allclose(out_bf16, ref, rtol=5e-2, atol=5e-2), (
        f"bf16 max abs err {jnp.max(jnp.abs(out_bf16 - ref))}")

    print("KERNEL_OK")
</pallas_src>

<mosaic_0001>
module attributes {stable_mosaic.version = 11 : i64} {
  func.func @kernel(%arg0: i32, %arg1: memref<5x16x128xf32, #tpu.memory_space<vmem>>, %arg2: memref<2x16x16xf32, #tpu.memory_space<vmem>>, %arg3: memref<1x128xf32, #tpu.memory_space<vmem>>, %arg4: memref<16x128xf32, #tpu.memory_space<vmem>>) attributes {dimension_semantics = [#tpu.dimension_semantics<parallel>], iteration_bounds = array<i64: 2>, scalar_prefetch = 0 : i64, scratch_operands = 0 : i64, tpu.core_type = #tpu.core_type<tc>, window_params = [{transform_indices = @transform_0, window_bounds = array<i64: 5, 16, 128>}, {pipeline_mode = #tpu.pipeline_mode<synchronous>, transform_indices = @transform_1, window_bounds = array<i64: 2, 16, 16>}, {pipeline_mode = #tpu.pipeline_mode<synchronous>, transform_indices = @transform_2, window_bounds = array<i64: 1, 128>}, {transform_indices = @transform_3, window_bounds = array<i64: 16, 128>}]} {
    %c0 = arith.constant 0 : index
    %c0_0 = arith.constant 0 : index
    %c0_1 = arith.constant 0 : index
    %0 = vector.load %arg1[%c0, %c0_0, %c0_1] : memref<5x16x128xf32, #tpu.memory_space<vmem>>, vector<1x16x128xf32>
    %1 = vector.shape_cast %0 : vector<1x16x128xf32> to vector<16x128xf32>
    %c0_2 = arith.constant 0 : index
    %c0_3 = arith.constant 0 : index
    %2 = vector.load %arg3[%c0_2, %c0_3] : memref<1x128xf32, #tpu.memory_space<vmem>>, vector<1x128xf32>
    %3 = vector.broadcast %2 : vector<1x128xf32> to vector<16x128xf32>
    %4 = arith.addf %1, %3 : vector<16x128xf32>
    %c0_4 = arith.constant 0 : index
    %c0_5 = arith.constant 0 : index
    %c0_6 = arith.constant 0 : index
    %5 = vector.load %arg2[%c0_4, %c0_5, %c0_6] : memref<2x16x16xf32, #tpu.memory_space<vmem>>, vector<1x16x16xf32>
    %6 = vector.shape_cast %5 : vector<1x16x16xf32> to vector<16x16xf32>
    %c2 = arith.constant 2 : index
    %c0_7 = arith.constant 0 : index
    %c0_8 = arith.constant 0 : index
    %7 = vector.load %arg1[%c2, %c0_7, %c0_8] : memref<5x16x128xf32, #tpu.memory_space<vmem>>, vector<1x16x128xf32>
    %8 = vector.shape_cast %7 : vector<1x16x128xf32> to vector<16x128xf32>
    %c1 = arith.constant 1 : index
    %c0_9 = arith.constant 0 : index
    %c0_10 = arith.constant 0 : index
    %9 = vector.load %arg1[%c1, %c0_9, %c0_10] : memref<5x16x128xf32, #tpu.memory_space<vmem>>, vector<1x16x128xf32>
    %10 = vector.shape_cast %9 : vector<1x16x128xf32> to vector<16x128xf32>
    %cst = arith.constant dense<0.000000e+00> : vector<16x128xf32>
    %11 = tpu.matmul %6, %8, %cst {dimension_numbers = #tpu.dot_dimension_numbers<[1], [0], [0], [1], [0, 0, 1, 1], [], []>} : vector<16x16xf32>, vector<16x128xf32>, vector<16x128xf32> -> vector<16x128xf32>
    %12 = arith.addf %10, %11 : vector<16x128xf32>
    %cst_11 = arith.constant dense<0.000000e+00> : vector<16x128xf32>
    %13 = tpu.matmul %6, %12, %cst_11 {dimension_numbers = #tpu.dot_dimension_numbers<[1], [0], [0], [1], [0, 0, 1, 1], [], []>} : vector<16x16xf32>, vector<16x128xf32>, vector<16x128xf32> -> vector<16x128xf32>
    %14 = arith.addf %4, %13 : vector<16x128xf32>
    %c1_12 = arith.constant 1 : index
    %c0_13 = arith.constant 0 : index
    %c0_14 = arith.constant 0 : index
    %15 = vector.load %arg2[%c1_12, %c0_13, %c0_14] : memref<2x16x16xf32, #tpu.memory_space<vmem>>, vector<1x16x16xf32>
    %16 = vector.shape_cast %15 : vector<1x16x16xf32> to vector<16x16xf32>
    %c4 = arith.constant 4 : index
    %c0_15 = arith.constant 0 : index
    %c0_16 = arith.constant 0 : index
    %17 = vector.load %arg1[%c4, %c0_15, %c0_16] : memref<5x16x128xf32, #tpu.memory_space<vmem>>, vector<1x16x128xf32>
    %18 = vector.shape_cast %17 : vector<1x16x128xf32> to vector<16x128xf32>
    %c3 = arith.constant 3 : index
    %c0_17 = arith.constant 0 : index
    %c0_18 = arith.constant 0 : index
    %19 = vector.load %arg1[%c3, %c0_17, %c0_18] : memref<5x16x128xf32, #tpu.memory_space<vmem>>, vector<1x16x128xf32>
    %20 = vector.shape_cast %19 : vector<1x16x128xf32> to vector<16x128xf32>
    %cst_19 = arith.constant dense<0.000000e+00> : vector<16x128xf32>
    %21 = tpu.matmul %16, %18, %cst_19 {dimension_numbers = #tpu.dot_dimension_numbers<[1], [0], [0], [1], [0, 0, 1, 1], [], []>} : vector<16x16xf32>, vector<16x128xf32>, vector<16x128xf32> -> vector<16x128xf32>
    %22 = arith.addf %20, %21 : vector<16x128xf32>
    %cst_20 = arith.constant dense<0.000000e+00> : vector<16x128xf32>
    %23 = tpu.matmul %16, %22, %cst_20 {dimension_numbers = #tpu.dot_dimension_numbers<[1], [0], [0], [1], [0, 0, 1, 1], [], []>} : vector<16x16xf32>, vector<16x128xf32>, vector<16x128xf32> -> vector<16x128xf32>
    %24 = arith.addf %14, %23 : vector<16x128xf32>
    %cst_21 = arith.constant 0.000000e+00 : f32
    %25 = vector.broadcast %cst_21 : f32 to vector<16x128xf32>
    %26 = arith.maximumf %24, %25 : vector<16x128xf32>
    %c0_22 = arith.constant 0 : index
    %c0_23 = arith.constant 0 : index
    %27 = vector.load %arg4[%c0_22, %c0_23] : memref<16x128xf32, #tpu.memory_space<vmem>>, vector<16x128xf32>
    tpu.vector_store %arg4[%c0_22, %c0_23], %26 {strides = array<i32>} : memref<16x128xf32, #tpu.memory_space<vmem>>, vector<16x128xf32>,
    return
  }
  func.func @transform_0(%arg0: i32) -> (i32, i32, i32) {
    %c0_i32 = arith.constant 0 : i32
    %c0_i32_0 = arith.constant 0 : i32
    %c0_i32_1 = arith.constant 0 : i32
    return %c0_i32, %c0_i32_0, %arg0 : i32, i32, i32
  }
  func.func @transform_1(%arg0: i32) -> (i32, i32, i32) {
    %c0_i32 = arith.constant 0 : i32
    %c0_i32_0 = arith.constant 0 : i32
    %c0_i32_1 = arith.constant 0 : i32
    %c0_i32_2 = arith.constant 0 : i32
    return %c0_i32, %c0_i32_0, %c0_i32_1 : i32, i32, i32
  }
  func.func @transform_2(%arg0: i32) -> (i32, i32) {
    %c0_i32 = arith.constant 0 : i32
    %c0_i32_0 = arith.constant 0 : i32
    %c0_i32_1 = arith.constant 0 : i32
    return %c0_i32, %c0_i32_0 : i32, i32
  }
  func.func @transform_3(%arg0: i32) -> (i32, i32) {
    %c0_i32 = arith.constant 0 : i32
    %c0_i32_0 = arith.constant 0 : i32
    return %c0_i32, %arg0 : i32, i32
  }
}

</mosaic_0001>

<llo_original>
// kernel: tpu_custom_call.1
$region0: #{tpu_custom_call.1}
  #allocation0 [shape = 'u32[]', space=smem, size = 0x4, offset = 0x4, fixed_abs, tag = 'smem constant byte address 0x4 - core index']
  #allocation1 [shape = 'u32[144,128]{1,0:T(1,128)}', space=vmem, size = 0x12000, scoped, tag = 'internal scratch']
  %s0 = inlined_call_operand.hbm [shape: f32[5,16,256], index: 0, kind: input, shape index: {}]
  %s1 = inlined_call_operand.hbm [shape: f32[2,16,16], index: 1, kind: input, shape index: {}]
  %s2 = inlined_call_operand.vmem [shape: f32[1,128], index: 2, kind: input, shape index: {}]
  %s3 = inlined_call_operand.hbm [shape: f32[16,256], index: 3, kind: output, shape index: {}]
  %s4 = sld [smem:[#allocation0]]
  $region53: #{tpu_custom_call.1} parent=0
    _
  %s6 = ssub.s32 1, %s4
  %s7 = scalar_select 0, %s6, %s4
  $region1: #{tpu_custom_call.1} parent=0
    #allocation2 [shape = 'u8[81920]{0}', space=vmem, size = 0x14000, scoped, tag = 'input window, operand 0']
    #allocation3 [shape = 's32[2]{0}', space=sflag, size = 0x8, scoped, tag = 'scoped memory for tpu_custom_call.1']
    #allocation4 [shape = 's32[2]{0}', space=sflag, size = 0x8, scoped, tag = 'scoped memory for tpu_custom_call.1']
    #allocation5 [shape = 'u8[16384]{0}', space=vmem, size = 0x4000, scoped, tag = 'input window, operand 1, single buffered']
    #allocation6 [shape = 's32[1]{0}', space=sflag, size = 0x4, scoped, tag = 'scoped memory for tpu_custom_call.1']
    #allocation7 [shape = 'u8[16384]{0}', space=vmem, size = 0x4000, scoped, tag = 'output window, operand 0']
    %8 = vsyncpa [#allocation3], 0
    %s9 = scalar_lea.sflag [#allocation3], 1
    %10 = vsyncpa %s9, 0
    %11 = vsyncpa [#allocation6], 0
    %12 = vsyncpa [#allocation4], 0
    %s13 = scalar_lea.sflag [#allocation4], 1
    %14 = vsyncpa %s13, 0
    loop: start=0, step=1, limit=4
    $region2: #{tpu_custom_call.1} parent=1 // loop_pre_header
      _
    $region3: #{tpu_custom_call.1} parent=1 // loop_header
      %s16 = sphi 0, %s20
      %p17 = scmp.ge.s32.totalorder %s16, 4
      %s26 = sphi 0, %s28
      %s29 = sphi 0, %s26
      %s30 = sphi 0, %s29
      %s46 = sphi 0, %s30
      %s50 = sphi 0, %s50
      %s52 = sphi 0, %s50
      %s53 = sphi 0, %s52
      %s67 = sphi 0, %s53
      %s71 = sphi 0, %s71
      %s73 = sphi 0, %s71
      %s74 = sphi 0, %s73
      %s88 = sphi 0, %s74
      %s94 = sphi 0, %s96
      %s97 = sphi 0, %s94
      %s98 = sphi 0, %s97
      %s114 = sphi 0, %s98
    $region4: #{tpu_custom_call.1} parent=1 // loop_header_branch
      %19 = sbr.rel (%p17) target = $region8
    $region5: #{tpu_custom_call.1} parent=1 // loop_body
      %s21 = ssub.s32 %s16, 1
      %s22 = ssub.s32 %s16, 2
      %s23 = sadd.s32 %s16, 1
      %s24 = ssub.s32 %s16, %s23
      %p25 = scmp.eq.s32.totalorder %s24, 0
      %s27 = sadd.s32 %s26, 1
      %s28 = scalar_select %p25, %s26, %s27
      %p31 = pneg %p25
      %p32 = scmp.eq.s32.totalorder %s16, 1
      %p33 = por %p31, %p32
      %p34 = scmp.ne.s32.totalorder %s26, %s29
      %p35 = scmp.eq.s32.totalorder %s16, 0
      %p36 = por %p34, %p35
      %p37 = scmp.ne.s32.totalorder %s26, %s29
      %p38 = scmp.eq.s32.totalorder %s21, 1
      %p39 = por %p37, %p38
      %p40 = scmp.ne.s32.totalorder %s29, %s30
      %p41 = scmp.eq.s32.totalorder %s21, 0
      %p42 = por %p40, %p41
      %p43 = scmp.ne.s32.totalorder %s29, %s30
      %p44 = scmp.eq.s32.totalorder %s22, 1
      %p45 = por %p43, %p44
      %p47 = scmp.ne.s32.totalorder %s30, %s46
      %p48 = scmp.eq.s32.totalorder %s22, 0
      %p49 = por %p47, %p48
      %s51 = sadd.s32 %s50, 1
      %p54 = scmp.eq.s32.totalorder %s16, 1
      %p55 = scmp.ne.s32.totalorder %s50, %s52
      %p56 = scmp.eq.s32.totalorder %s16, 0
      %p57 = por %p55, %p56
      %p58 = scmp.ne.s32.totalorder %s50, %s52
      %p59 = scmp.eq.s32.totalorder %s21, 1
      %p60 = por %p58, %p59
      %p61 = scmp.ne.s32.totalorder %s52, %s53
      %p62 = scmp.eq.s32.totalorder %s21, 0
      %p63 = por %p61, %p62
      %p64 = scmp.ne.s32.totalorder %s52, %s53
      %p65 = scmp.eq.s32.totalorder %s22, 1
      %p66 = por %p64, %p65
      %p68 = scmp.ne.s32.totalorder %s53, %s67
      %p69 = scmp.eq.s32.totalorder %s22, 0
      %p70 = por %p68, %p69
      %s72 = sadd.s32 %s71, 1
      %p75 = scmp.eq.s32.totalorder %s16, 1
      %p76 = scmp.ne.s32.totalorder %s71, %s73
      %p77 = scmp.eq.s32.totalorder %s16, 0
      %p78 = por %p76, %p77
      %p79 = scmp.ne.s32.totalorder %s71, %s73
      %p80 = scmp.eq.s32.totalorder %s21, 1
      %p81 = por %p79, %p80
      %p82 = scmp.ne.s32.totalorder %s73, %s74
      %p83 = scmp.eq.s32.totalorder %s21, 0
      %p84 = por %p82, %p83
      %p85 = scmp.ne.s32.totalorder %s73, %s74
      %p86 = scmp.eq.s32.totalorder %s22, 1
      %p87 = por %p85, %p86
      %p89 = scmp.ne.s32.totalorder %s74, %s88
      %p90 = scmp.eq.s32.totalorder %s22, 0
      %p91 = por %p89, %p90
      %s92 = ssub.s32 %s16, %s23
      %p93 = scmp.eq.s32.totalorder %s92, 0
      %s95 = sadd.s32 %s94, 1
      %s96 = scalar_select %p93, %s94, %s95
      %p99 = pneg %p93
      %p100 = scmp.eq.s32.totalorder %s16, 1
      %p101 = por %p99, %p100
      %p102 = scmp.ne.s32.totalorder %s94, %s97
      %p103 = scmp.eq.s32.totalorder %s16, 0
      %p104 = por %p102, %p103
      %p105 = scmp.ne.s32.totalorder %s94, %s97
      %p106 = scmp.eq.s32.totalorder %s21, 1
      %p107 = por %p105, %p106
      %p108 = scmp.ne.s32.totalorder %s97, %s98
      %p109 = scmp.eq.s32.totalorder %s21, 0
      %p110 = por %p108, %p109
      %p111 = scmp.ne.s32.totalorder %s97, %s98
      %p112 = scmp.eq.s32.totalorder %s22, 1
      %p113 = por %p111, %p112
      %p115 = scmp.ne.s32.totalorder %s98, %s114
      %p116 = scmp.eq.s32.totalorder %s22, 0
      %p117 = por %p115, %p116
      %p118 = scmp.le.s32.totalorder 1, %s16
      %p119 = scmp.lt.s32.totalorder %s16, 3
      %p120 = pnand %p118, %p119
      %p121 = pneg %p120
      // Predicated region
      $region9: #{tpu_custom_call.1} parent=5 // pred_check
        _
      $region10: #{tpu_custom_call.1} parent=5 // pred_check_branch
        %123 = sbr.rel (%p120) target = $region12
      $region11: #{tpu_custom_call.1} parent=5 // pred_region
        %s124 = ssub.s32 %s16, 1
        // Predicated region
        $region13: #{tpu_custom_call.1} parent=11 // pred_check
          %p125 = pneg %p63
        $region14: #{tpu_custom_call.1} parent=11 // pred_check_branch
          %127 = sbr.rel (%p125) target = $region16
        $region15: #{tpu_custom_call.1} parent=11 // pred_region
          %s129 = ssub.s32 512, 512
          %130 = vsyncadd [#allocation6], %s129
          %s131 = sshll.u32 [#allocation5], 4
          %s132 = int_to_ptr.vmem [resolvable:$true] %s131
          %137 = dma.hbm_to_vmem [thread:$0]  %s1, 512, %s132, [#allocation6], 128, 128, 8
        $region16: #{tpu_custom_call.1} parent=11 // pred_fallthru
          _
        // Predicated region
        $region17: #{tpu_custom_call.1} parent=11 // pred_check
          %p138 = pneg %p84
        $region18: #{tpu_custom_call.1} parent=11 // pred_check_branch
          %140 = sbr.rel (%p138) target = $region20
        $region19: #{tpu_custom_call.1} parent=11 // pred_region
          _
        $region20: #{tpu_custom_call.1} parent=11 // pred_fallthru
          _
      $region12: #{tpu_custom_call.1} parent=5 // pred_fallthru
        _
      %p141 = scmp.lt.s32.totalorder %s16, 2
      // Predicated region
      $region21: #{tpu_custom_call.1} parent=5 // pred_check
        %p142 = pneg %p141
      $region22: #{tpu_custom_call.1} parent=5 // pred_check_branch
        %144 = sbr.rel (%p142) target = $region24
      $region23: #{tpu_custom_call.1} parent=5 // pred_region
        // Predicated region
        $region25: #{tpu_custom_call.1} parent=23 // pred_check
          %p145 = pneg %p36
        $region26: #{tpu_custom_call.1} parent=23 // pred_check_branch
          %147 = sbr.rel (%p145) target = $region28
        $region27: #{tpu_custom_call.1} parent=23 // pred_region
          %s148 = sand.u32 %s26, 1
          %s149 = scalar_lea.sflag [#allocation3], %s148
          %s150 = sand.u32 %s26, 1
          %s151 = smul.addr %s150, 80
          %s152 = scalar_lea.vmem [#allocation2], %s151
          %s154 = ssub.s32 1280, 1280
          %155 = vsyncadd %s149, %s154
          %s156 = smul.addr %s16, 128
          %s157 = scalar_lea.hbm %s0, %s156
          %s158 = sshll.u32 %s152, 4
          %s159 = int_to_ptr.vmem [resolvable:$true] %s158
          %164 = dma.hbm_to_vmem [thread:$0]  %s157, 1280, %s159, %s149, 256, 128, 8
        $region28: #{tpu_custom_call.1} parent=23 // pred_fallthru
          _
      $region24: #{tpu_custom_call.1} parent=5 // pred_fallthru
        _
      %p165 = scmp.le.s32.totalorder 1, %s16
      %p166 = scmp.lt.s32.totalorder %s16, 3
      %p167 = pnand %p165, %p166
      %p168 = pneg %p167
      // Predicated region
      $region29: #{tpu_custom_call.1} parent=5 // pred_check
        _
      $region30: #{tpu_custom_call.1} parent=5 // pred_check_branch
        %170 = sbr.rel (%p167) target = $region32
      $region31: #{tpu_custom_call.1} parent=5 // pred_region
        %s171 = ssub.s32 %s16, 1
        %s172 = sand.u32 %s29, 1
        %s173 = scalar_lea.sflag [#allocation3], %s172
        %s174 = sand.u32 %s29, 1
        %s175 = smul.addr %s174, 80
        %s176 = scalar_lea.vmem [#allocation2], %s175
        // Predicated region
        $region33: #{tpu_custom_call.1} parent=31 // pred_check
          %p177 = pneg %p42
        $region34: #{tpu_custom_call.1} parent=31 // pred_check_branch
          %179 = sbr.rel (%p177) target = $region36
        $region35: #{tpu_custom_call.1} parent=31 // pred_region
          %180 = dma.done %s173, 1280
        $region36: #{tpu_custom_call.1} parent=31 // pred_fallthru
          _
        // Predicated region
        $region37: #{tpu_custom_call.1} parent=31 // pred_check
          %p181 = pneg %p63
        $region38: #{tpu_custom_call.1} parent=31 // pred_check_branch
          %183 = sbr.rel (%p181) target = $region40
        $region39: #{tpu_custom_call.1} parent=31 // pred_region
          %184 = dma.done [#allocation6], 512
        $region40: #{tpu_custom_call.1} parent=31 // pred_fallthru
          _
        %s185 = sand.u32 %s29, 1
        %s186 = scalar_lea.sflag [#allocation3], %s185
        %s187 = sand.u32 %s29, 1
        %s188 = smul.addr %s187, 80
        %s189 = scalar_lea.vmem [#allocation2], %s188
        %p190 = pneg %p42
        %p191 = pneg %p39
        %p192 = pneg %p63
        %p193 = pneg %p60
        %p194 = pneg %p84
        %p195 = pneg %p81
        %p196 = pneg %p110
        %p197 = pneg %p107
        %s198 = sand.u32 %s97, 1
        %s199 = scalar_lea.sflag [#allocation4], %s198
        %s200 = sand.u32 %s97, 1
        %s201 = smul.addr %s200, 16
        %s202 = scalar_lea.vmem [#allocation7], %s201
        %v203 = vld [vmem:[%s176] sm:$0xff]
        %v204 = vld [vmem:[%s176 + $0x8] sm:$0xff]
        %v205 = vld [vmem:[%s2] sm:$0x1]
        %v207 = vlaneseq
        %v208 = vshrl.u32 %v207, 7
        %v209 = vsub.s32 0, %v208
        %v210 = vrot.slane %v205, %v209
        %v212 = vadd.f32 %v203, %v210
        %v213 = vadd.f32 %v204, %v210
        %v214 = vld [vmem:[#allocation5] sm:$0xff]
        %v215 = vld [vmem:[#allocation5 + $0x8] sm:$0xff]
        %s216 = scalar_lea.vmem %s176, 32 [#allocation2]
        %v217 = vld [vmem:[%s216] sm:$0xff]
        %v218 = vld [vmem:[%s216 + $0x8] sm:$0xff]
        %s219 = scalar_lea.vmem %s176, 16 [#allocation2]
        %v220 = vld [vmem:[%s219] sm:$0xff]
        %v221 = vld [vmem:[%s219 + $0x8] sm:$0xff]
        %vm222 = vcmask 130048
        %v224 = vsel %vm222, %v214, 0
        %v227 = vsel %vm222, %v215, 0
        %229 = vmatprep.subr.mxu0 0.0
        %230 = vmatpush1.msra.mxu0 %v217
        %231 = vmatprep.subr.mxu0 0.0
        %232 = vmatpush1.msra.mxu0 %v218
        %233 = vmatprep.subr.mxu0 0.0
        %234 = vmatpush1.msra.mxu0 0.0
        %235 = vmatprep.subr.mxu0 0.0
        %236 = vmatpush1.msra.mxu0 0.0
        %237 = vmatprep.subr.mxu0 0.0
        %238 = vmatpush1.msra.mxu0 0.0
        %239 = vmatprep.subr.mxu0 0.0
        %240 = vmatpush1.msra.mxu0 0.0
        %241 = vmatprep.subr.mxu0 0.0
        %242 = vmatpush1.msra.mxu0 0.0
        %243 = vmatprep.subr.mxu0 0.0
        %244 = vmatpush1.msra.mxu0 0.0
        %245 = vmatprep.subr.mxu0 0.0
        %246 = vmatpush1.msra.mxu0 0.0
        %247 = vmatprep.subr.mxu0 0.0
        %248 = vmatpush1.msra.mxu0 0.0
        %249 = vmatprep.subr.mxu0 0.0
        %250 = vmatpush1.msra.mxu0 0.0
        %251 = vmatprep.subr.mxu0 0.0
        %252 = vmatpush1.msra.mxu0 0.0
        %253 = vmatprep.subr.mxu0 0.0
        %254 = vmatpush1.msra.mxu0 0.0
        %255 = vmatprep.subr.mxu0 0.0
        %256 = vmatpush1.msra.mxu0 0.0
        %257 = vmatprep.subr.mxu0 0.0
        %258 = vmatpush1.msra.mxu0 0.0
        %259 = vmatprep.subr.mxu0 0.0
        %260 = vmatpush1.msra.mxu0 0.0
        %261 = vmatprep.subr.mxu0 0.0
        %262 = vmatpush1.msra.mxu0 0.0
        %263 = vmatprep.subr.mxu0 0.0
        %264 = vmatpush1.msra.mxu0 0.0
        %265 = vmatprep.subr.mxu0 0.0
        %266 = vmatpush1.msra.mxu0 0.0
        %267 = vmatprep.subr.mxu0 0.0
        %268 = vmatpush1.msra.mxu0 0.0
        %269 = vmatprep.subr.mxu0 0.0
        %270 = vmatpush1.msra.mxu0 0.0
        %271 = vmatprep.subr.mxu0 0.0
        %272 = vmatpush1.msra.mxu0 0.0
        %273 = vmatprep.subr.mxu0 0.0
        %274 = vmatpush1.msra.mxu0 0.0
        %275 = vmatprep.subr.mxu0 0.0
        %276 = vmatpush1.msra.mxu0 0.0
        %277 = vmatprep.subr.mxu0 0.0
        %278 = vmatpush1.msra.mxu0 0.0
        %279 = vmatprep.subr.mxu0 0.0
        %280 = vmatpush1.msra.mxu0 0.0
        %281 = vmatprep.subr.mxu0 0.0
        %282 = vmatpush1.msra.mxu0 0.0
        %283 = vmatprep.subr.mxu0 0.0
        %284 = vmatpush1.msra.mxu0 0.0
        %285 = vmatprep.subr.mxu0 0.0
        %286 = vmatpush1.msra.mxu0 0.0
        %287 = vmatprep.subr.mxu0 0.0
        %288 = vmatpush1.msra.mxu0 0.0
        %289 = vmatprep.subr.mxu0 0.0
        %290 = vmatpush1.msra.mxu0 0.0
        %291 = vmatprep.subr.mxu0 0.0
        %292 = vmatpush1.msra.mxu0 0.0
        %293 = vmatprep.mubr.f32.mxu0 0.0
        %294 = vmatmul.mubr.f32.gmra.mrb[0].mxu0 %v224
        %v295 = vpop.f32.mrb[0].mxu0
        %v296 = vadd.f32 0.0, %v295
        %v297 = vpop.f32.mrb[0].mxu0
        %298 = vmatprep.mubr.f32.mxu0 0.0
        %299 = vmatmul.mubr.f32.gmra.mrb[0].mxu0 %v227
        %v300 = vpop.f32.mrb[0].mxu0
        %v301 = vadd.f32 0.0, %v300
        %v302 = vpop.f32.mrb[0].mxu0
        %303 = vdwg.mxu0
        %v304 = vadd.f32 %v220, %v296
        %v305 = vadd.f32 %v221, %v301
        %306 = vmatprep.subr.mxu0 0.0
        %307 = vmatpush1.msra.mxu0 %v304
        %308 = vmatprep.subr.mxu0 0.0
        %309 = vmatpush1.msra.mxu0 %v305
        %310 = vmatprep.subr.mxu0 0.0
        %311 = vmatpush1.msra.mxu0 0.0
        %312 = vmatprep.subr.mxu0 0.0
        %313 = vmatpush1.msra.mxu0 0.0
        %314 = vmatprep.subr.mxu0 0.0
        %315 = vmatpush1.msra.mxu0 0.0
        %316 = vmatprep.subr.mxu0 0.0
        %317 = vmatpush1.msra.mxu0 0.0
        %318 = vmatprep.subr.mxu0 0.0
        %319 = vmatpush1.msra.mxu0 0.0
        %320 = vmatprep.subr.mxu0 0.0
        %321 = vmatpush1.msra.mxu0 0.0
        %322 = vmatprep.subr.mxu0 0.0
        %323 = vmatpush1.msra.mxu0 0.0
        %324 = vmatprep.subr.mxu0 0.0
        %325 = vmatpush1.msra.mxu0 0.0
        %326 = vmatprep.subr.mxu0 0.0
        %327 = vmatpush1.msra.mxu0 0.0
        %328 = vmatprep.subr.mxu0 0.0
        %329 = vmatpush1.msra.mxu0 0.0
        %330 = vmatprep.subr.mxu0 0.0
        %331 = vmatpush1.msra.mxu0 0.0
        %332 = vmatprep.subr.mxu0 0.0
        %333 = vmatpush1.msra.mxu0 0.0
        %334 = vmatprep.subr.mxu0 0.0
        %335 = vmatpush1.msra.mxu0 0.0
        %336 = vmatprep.subr.mxu0 0.0
        %337 = vmatpush1.msra.mxu0 0.0
        %338 = vmatprep.subr.mxu0 0.0
        %339 = vmatpush1.msra.mxu0 0.0
        %340 = vmatprep.subr.mxu0 0.0
        %341 = vmatpush1.msra.mxu0 0.0
        %342 = vmatprep.subr.mxu0 0.0
        %343 = vmatpush1.msra.mxu0 0.0
        %344 = vmatprep.subr.mxu0 0.0
        %345 = vmatpush1.msra.mxu0 0.0
        %346 = vmatprep.subr.mxu0 0.0
        %347 = vmatpush1.msra.mxu0 0.0
        %348 = vmatprep.subr.mxu0 0.0
        %349 = vmatpush1.msra.mxu0 0.0
        %350 = vmatprep.subr.mxu0 0.0
        %351 = vmatpush1.msra.mxu0 0.0
        %352 = vmatprep.subr.mxu0 0.0
        %353 = vmatpush1.msra.mxu0 0.0
        %354 = vmatprep.subr.mxu0 0.0
        %355 = vmatpush1.msra.mxu0 0.0
        %356 = vmatprep.subr.mxu0 0.0
        %357 = vmatpush1.msra.mxu0 0.0
        %358 = vmatprep.subr.mxu0 0.0
        %359 = vmatpush1.msra.mxu0 0.0
        %360 = vmatprep.subr.mxu0 0.0
        %361 = vmatpush1.msra.mxu0 0.0
        %362 = vmatprep.subr.mxu0 0.0
        %363 = vmatpush1.msra.mxu0 0.0
        %364 = vmatprep.subr.mxu0 0.0
        %365 = vmatpush1.msra.mxu0 0.0
        %366 = vmatprep.subr.mxu0 0.0
        %367 = vmatpush1.msra.mxu0 0.0
        %368 = vmatprep.subr.mxu0 0.0
        %369 = vmatpush1.msra.mxu0 0.0
        %370 = vmatprep.mubr.f32.mxu0 0.0
        %371 = vmatmul.mubr.f32.gmra.mrb[0].mxu0 %v224
        %v372 = vpop.f32.mrb[0].mxu0
        %v373 = vadd.f32 0.0, %v372
        %v374 = vpop.f32.mrb[0].mxu0
        %375 = vmatprep.mubr.f32.mxu0 0.0
        %376 = vmatmul.mubr.f32.gmra.mrb[0].mxu0 %v227
        %v377 = vpop.f32.mrb[0].mxu0
        %v378 = vadd.f32 0.0, %v377
        %v379 = vpop.f32.mrb[0].mxu0
        %380 = vdwg.mxu0
        %v381 = vadd.f32 %v212, %v373
        %v382 = vadd.f32 %v213, %v378
        %s383 = scalar_lea.vmem [#allocation5], 16
        %v384 = vld [vmem:[%s383] sm:$0xff]
        %v385 = vld [vmem:[%s383 + $0x8] sm:$0xff]
        %s386 = scalar_lea.vmem %s176, 64 [#allocation2]
        %v387 = vld [vmem:[%s386] sm:$0xff]
        %v388 = vld [vmem:[%s386 + $0x8] sm:$0xff]
        %s389 = scalar_lea.vmem %s176, 48 [#allocation2]
        %v390 = vld [vmem:[%s389] sm:$0xff]
        %v391 = vld [vmem:[%s389 + $0x8] sm:$0xff]
        %v393 = vsel %vm222, %v384, 0
        %v396 = vsel %vm222, %v385, 0
        %398 = vmatprep.subr.mxu0 0.0
        %399 = vmatpush1.msra.mxu0 %v387
        %400 = vmatprep.subr.mxu0 0.0
        %401 = vmatpush1.msra.mxu0 %v388
        %402 = vmatprep.subr.mxu0 0.0
        %403 = vmatpush1.msra.mxu0 0.0
        %404 = vmatprep.subr.mxu0 0.0
        %405 = vmatpush1.msra.mxu0 0.0
        %406 = vmatprep.subr.mxu0 0.0
        %407 = vmatpush1.msra.mxu0 0.0
        %408 = vmatprep.subr.mxu0 0.0
        %409 = vmatpush1.msra.mxu0 0.0
        %410 = vmatprep.subr.mxu0 0.0
        %411 = vmatpush1.msra.mxu0 0.0
        %412 = vmatprep.subr.mxu0 0.0
        %413 = vmatpush1.msra.mxu0 0.0
        %414 = vmatprep.subr.mxu0 0.0
        %415 = vmatpush1.msra.mxu0 0.0
        %416 = vmatprep.subr.mxu0 0.0
        %417 = vmatpush1.msra.mxu0 0.0
        %418 = vmatprep.subr.mxu0 0.0
        %419 = vmatpush1.msra.mxu0 0.0
        %420 = vmatprep.subr.mxu0 0.0
        %421 = vmatpush1.msra.mxu0 0.0
        %422 = vmatprep.subr.mxu0 0.0
        %423 = vmatpush1.msra.mxu0 0.0
        %424 = vmatprep.subr.mxu0 0.0
        %425 = vmatpush1.msra.mxu0 0.0
        %426 = vmatprep.subr.mxu0 0.0
        %427 = vmatpush1.msra.mxu0 0.0
        %428 = vmatprep.subr.mxu0 0.0
        %429 = vmatpush1.msra.mxu0 0.0
        %430 = vmatprep.subr.mxu0 0.0
        %431 = vmatpush1.msra.mxu0 0.0
        %432 = vmatprep.subr.mxu0 0.0
        %433 = vmatpush1.msra.mxu0 0.0
        %434 = vmatprep.subr.mxu0 0.0
        %435 = vmatpush1.msra.mxu0 0.0
        %436 = vmatprep.subr.mxu0 0.0
        %437 = vmatpush1.msra.mxu0 0.0
        %438 = vmatprep.subr.mxu0 0.0
        %439 = vmatpush1.msra.mxu0 0.0
        %440 = vmatprep.subr.mxu0 0.0
        %441 = vmatpush1.msra.mxu0 0.0
        %442 = vmatprep.subr.mxu0 0.0
        %443 = vmatpush1.msra.mxu0 0.0
        %444 = vmatprep.subr.mxu0 0.0
        %445 = vmatpush1.msra.mxu0 0.0
        %446 = vmatprep.subr.mxu0 0.0
        %447 = vmatpush1.msra.mxu0 0.0
        %448 = vmatprep.subr.mxu0 0.0
        %449 = vmatpush1.msra.mxu0 0.0
        %450 = vmatprep.subr.mxu0 0.0
        %451 = vmatpush1.msra.mxu0 0.0
        %452 = vmatprep.subr.mxu0 0.0
        %453 = vmatpush1.msra.mxu0 0.0
        %454 = vmatprep.subr.mxu0 0.0
        %455 = vmatpush1.msra.mxu0 0.0
        %456 = vmatprep.subr.mxu0 0.0
        %457 = vmatpush1.msra.mxu0 0.0
        %458 = vmatprep.subr.mxu0 0.0
        %459 = vmatpush1.msra.mxu0 0.0
        %460 = vmatprep.subr.mxu0 0.0
        %461 = vmatpush1.msra.mxu0 0.0
        %462 = vmatprep.mubr.f32.mxu0 0.0
        %463 = vmatmul.mubr.f32.gmra.mrb[0].mxu0 %v393
        %v464 = vpop.f32.mrb[0].mxu0
        %v465 = vadd.f32 0.0, %v464
        %v466 = vpop.f32.mrb[0].mxu0
        %467 = vmatprep.mubr.f32.mxu0 0.0
        %468 = vmatmul.mubr.f32.gmra.mrb[0].mxu0 %v396
        %v469 = vpop.f32.mrb[0].mxu0
        %v470 = vadd.f32 0.0, %v469
        %v471 = vpop.f32.mrb[0].mxu0
        %472 = vdwg.mxu0
        %v473 = vadd.f32 %v390, %v465
        %v474 = vadd.f32 %v391, %v470
        %475 = vmatprep.subr.mxu0 0.0
        %476 = vmatpush1.msra.mxu0 %v473
        %477 = vmatprep.subr.mxu0 0.0
        %478 = vmatpush1.msra.mxu0 %v474
        %479 = vmatprep.subr.mxu0 0.0
        %480 = vmatpush1.msra.mxu0 0.0
        %481 = vmatprep.subr.mxu0 0.0
        %482 = vmatpush1.msra.mxu0 0.0
        %483 = vmatprep.subr.mxu0 0.0
        %484 = vmatpush1.msra.mxu0 0.0
        %485 = vmatprep.subr.mxu0 0.0
        %486 = vmatpush1.msra.mxu0 0.0
        %487 = vmatprep.subr.mxu0 0.0
        %488 = vmatpush1.msra.mxu0 0.0
        %489 = vmatprep.subr.mxu0 0.0
        %490 = vmatpush1.msra.mxu0 0.0
        %491 = vmatprep.subr.mxu0 0.0
        %492 = vmatpush1.msra.mxu0 0.0
        %493 = vmatprep.subr.mxu0 0.0
        %494 = vmatpush1.msra.mxu0 0.0
        %495 = vmatprep.subr.mxu0 0.0
        %496 = vmatpush1.msra.mxu0 0.0
        %497 = vmatprep.subr.mxu0 0.0
        %498 = vmatpush1.msra.mxu0 0.0
        %499 = vmatprep.subr.mxu0 0.0
        %500 = vmatpush1.msra.mxu0 0.0
        %501 = vmatprep.subr.mxu0 0.0
        %502 = vmatpush1.msra.mxu0 0.0
        %503 = vmatprep.subr.mxu0 0.0
        %504 = vmatpush1.msra.mxu0 0.0
        %505 = vmatprep.subr.mxu0 0.0
        %506 = vmatpush1.msra.mxu0 0.0
        %507 = vmatprep.subr.mxu0 0.0
        %508 = vmatpush1.msra.mxu0 0.0
        %509 = vmatprep.subr.mxu0 0.0
        %510 = vmatpush1.msra.mxu0 0.0
        %511 = vmatprep.subr.mxu0 0.0
        %512 = vmatpush1.msra.mxu0 0.0
        %513 = vmatprep.subr.mxu0 0.0
        %514 = vmatpush1.msra.mxu0 0.0
        %515 = vmatprep.subr.mxu0 0.0
        %516 = vmatpush1.msra.mxu0 0.0
        %517 = vmatprep.subr.mxu0 0.0
        %518 = vmatpush1.msra.mxu0 0.0
        %519 = vmatprep.subr.mxu0 0.0
        %520 = vmatpush1.msra.mxu0 0.0
        %521 = vmatprep.subr.mxu0 0.0
        %522 = vmatpush1.msra.mxu0 0.0
        %523 = vmatprep.subr.mxu0 0.0
        %524 = vmatpush1.msra.mxu0 0.0
        %525 = vmatprep.subr.mxu0 0.0
        %526 = vmatpush1.msra.mxu0 0.0
        %527 = vmatprep.subr.mxu0 0.0
        %528 = vmatpush1.msra.mxu0 0.0
        %529 = vmatprep.subr.mxu0 0.0
        %530 = vmatpush1.msra.mxu0 0.0
        %531 = vmatprep.subr.mxu0 0.0
        %532 = vmatpush1.msra.mxu0 0.0
        %533 = vmatprep.subr.mxu0 0.0
        %534 = vmatpush1.msra.mxu0 0.0
        %535 = vmatprep.subr.mxu0 0.0
        %536 = vmatpush1.msra.mxu0 0.0
        %537 = vmatprep.subr.mxu0 0.0
        %538 = vmatpush1.msra.mxu0 0.0
        %539 = vmatprep.mubr.f32.mxu0 0.0
        %540 = vmatmul.mubr.f32.gmra.mrb[0].mxu0 %v393
        %v541 = vpop.f32.mrb[0].mxu0
        %v542 = vadd.f32 0.0, %v541
        %v543 = vpop.f32.mrb[0].mxu0
        %544 = vmatprep.mubr.f32.mxu0 0.0
        %545 = vmatmul.mubr.f32.gmra.mrb[0].mxu0 %v396
        %v546 = vpop.f32.mrb[0].mxu0
        %v547 = vadd.f32 0.0, %v546
        %v548 = vpop.f32.mrb[0].mxu0
        %549 = vdwg.mxu0
        %v550 = vadd.f32 %v381, %v542
        %v551 = vadd.f32 %v382, %v547
        %v552 = vmax.f32 %v550, 0.0
        %v553 = vmax.f32 %v551, 0.0
        %554 = vst [vmem:[%s202] sm:$0xff] %v552
        %555 = vst [vmem:[%s202 + $0x8] sm:$0xff] %v553
        %s556 = sand.u32 %s97, 1
        %s557 = scalar_lea.sflag [#allocation4], %s556
        %s558 = sand.u32 %s97, 1
        %s559 = smul.addr %s558, 16
        %s560 = scalar_lea.vmem [#allocation7], %s559
        // Predicated region
        $region41: #{tpu_custom_call.1} parent=31 // pred_check
          %p561 = pneg %p107
        $region42: #{tpu_custom_call.1} parent=31 // pred_check_branch
          %563 = sbr.rel (%p561) target = $region44
        $region43: #{tpu_custom_call.1} parent=31 // pred_region
          %s565 = ssub.s32 256, 256
          %566 = vsyncadd %s557, %s565
          %s567 = smul.addr %s21, 128
          %s568 = scalar_lea.hbm %s3, %s567
          %s569 = sshll.u32 %s560, 4
          %s570 = int_to_ptr.vmem [resolvable:$true] %s569
          %575 = dma.vmem_to_hbm [thread:$0]  %s570, 256, %s568, %s557, 128, 256, 8
        $region44: #{tpu_custom_call.1} parent=31 // pred_fallthru
          _
      $region32: #{tpu_custom_call.1} parent=5 // pred_fallthru
        _
      %p576 = scmp.le.s32.totalorder 2, %s16
      // Predicated region
      $region45: #{tpu_custom_call.1} parent=5 // pred_check
        %p577 = pneg %p576
      $region46: #{tpu_custom_call.1} parent=5 // pred_check_branch
        %579 = sbr.rel (%p577) target = $region48
      $region47: #{tpu_custom_call.1} parent=5 // pred_region
        %s580 = ssub.s32 %s16, 2
        // Predicated region
        $region49: #{tpu_custom_call.1} parent=47 // pred_check
          %p581 = pneg %p113
        $region50: #{tpu_custom_call.1} parent=47 // pred_check_branch
          %583 = sbr.rel (%p581) target = $region52
        $region51: #{tpu_custom_call.1} parent=47 // pred_region
          %s584 = sand.u32 %s98, 1
          %s585 = scalar_lea.sflag [#allocation4], %s584
          %s586 = sand.u32 %s98, 1
          %s587 = smul.addr %s586, 16
          %s588 = scalar_lea.vmem [#allocation7], %s587
          %589 = dma.done %s585, 256
        $region52: #{tpu_custom_call.1} parent=47 // pred_fallthru
          _
      $region48: #{tpu_custom_call.1} parent=5 // pred_fallthru
        _
    $region6: #{tpu_custom_call.1} parent=1 // loop_footer
      %s20 = sadd.s32 1, %s16
    $region7: #{tpu_custom_call.1} parent=1 // loop_footer_branch
      %15 = sbr.rel target = $region3
    $region8: #{tpu_custom_call.1} parent=1 // loop_exit
      _
    %590 = vsyncpa [#allocation3], 1
    %s591 = scalar_lea.sflag [#allocation3], 1
    %592 = vsyncpa %s591, 1
    %593 = vsyncpa [#allocation6], 1
    %594 = vsyncpa [#allocation4], 1
    %s595 = scalar_lea.sflag [#allocation4], 1
    %596 = vsyncpa %s595, 1

</llo_original>
